<compile_context>
chip_gen: v5e
topology: v5e:2x2
jax: 0.10.0
libtpu: 0.0.40
codegen_flags: <defaults>
</compile_context>

<pallas_src>
import functools

import jax
import jax.numpy as jnp
from jax.experimental import pallas as pl
from jax.experimental.pallas import tpu as pltpu


# ----------------------------- Pallas kernel ------------------------------ #
def _conv_gn_lrelu_kernel(pt_ref, w_ref, gamma_ref, beta_ref, o_ref,
                          *, groups, cg, hw, eps, slope):
    # pt_ref:    (1, K, HW)  bf16  im2col patches (transposed) for one sample
    # w_ref:     (C, K)      bf16  flattened conv weight (Cout, Cin*kh*kw)
    # gamma_ref: (C, 1)      f32   GroupNorm scale
    # beta_ref:  (C, 1)      f32   GroupNorm shift
    # o_ref:     (1, C, HW)  f32   NCHW-flat output for this sample
    p = pt_ref[0]                                          # (K, HW) bf16
    # MXU matmul, bf16 inputs, f32 accumulation.  Result is lane-dense (HW lanes).
    y = jnp.dot(w_ref[...], p, preferred_element_type=jnp.float32)   # (C, HW)

    # --- GroupNorm: one reduction pass over the big tile (no concat) ------
    s1 = jnp.sum(y, axis=1, keepdims=True)                 # (C, 1)
    s2 = jnp.sum(y * y, axis=1, keepdims=True)             # (C, 1)

    c = y.shape[0]
    ch = jax.lax.broadcasted_iota(jnp.int32, (c, 1), 0)    # channel index per row
    inv_cnt = 1.0 / float(cg * hw)
    mu_full = jnp.zeros((c, 1), jnp.float32)
    rstd_full = jnp.zeros((c, 1), jnp.float32)
    for g in range(groups):          # static; only touches (cg,1)-sized slivers
        lo = g * cg
        gs1 = jnp.sum(s1[lo:lo + cg, :], keepdims=True)    # (1, 1)
        gs2 = jnp.sum(s2[lo:lo + cg, :], keepdims=True)    # (1, 1)
        mu = gs1 * inv_cnt
        var = gs2 * inv_cnt - mu * mu
        rstd = jax.lax.rsqrt(var + eps)
        mask = (ch >= lo) & (ch < lo + cg)
        mu_full = jnp.where(mask, mu, mu_full)
        rstd_full = jnp.where(mask, rstd, rstd_full)

    # Single fused normalize + affine + LeakyReLU(0.01), all f32, HW lanes.
    z = (y - mu_full) * rstd_full * gamma_ref[...] + beta_ref[...]
    o_ref[0] = jnp.where(z >= 0, z, slope * z)


# ------------------------------- JAX glue ---------------------------------- #
def _reflect_pad(x, p):
    # Matches torch.nn.ReflectionPad2d (edge not repeated).
    return jnp.pad(x, ((0, 0), (0, 0), (p, p), (p, p)), mode="reflect")


def _im2col_t(xp, k, stride):
    # xp: (N, C, H, W) padded NCHW -> patches_T (N, C*k*k, Ho*Wo).
    # K ordering is (c, kh, kw), matching weight.reshape(Cout, Cin*k*k).
    n, c, h, w = xp.shape
    ho = (h - k) // stride + 1
    wo = (w - k) // stride + 1
    taps = []
    for i in range(k):
        for j in range(k):
            taps.append(xp[:, :, i:i + stride * ho:stride, j:j + stride * wo:stride])
    p = jnp.stack(taps, axis=2)                            # (N, C, k*k, Ho, Wo)
    return p.reshape(n, c * k * k, ho * wo), ho, wo


def conv_block(x, weight, gamma, beta, *, stride, groups, eps=1e-5, slope=0.01):
    """ReflectionPad -> Conv2d(no bias) -> GroupNorm -> LeakyReLU, NCHW in/out."""
    cout, cin, k, _ = weight.shape
    xp = _reflect_pad(x, k // 2) if k > 1 else x
    patches_t, ho, wo = _im2col_t(xp, k, stride)
    n, kk, hw = patches_t.shape
    wmat = weight.reshape(cout, cin * k * k)               # (Cout, K), no transpose

    kernel = functools.partial(_conv_gn_lrelu_kernel, groups=groups,
                               cg=cout // groups, hw=hw, eps=eps, slope=slope)

    out = pl.pallas_call(
        kernel,
        out_shape=jax.ShapeDtypeStruct((n, cout, hw), jnp.float32),
        grid_spec=pltpu.PrefetchScalarGridSpec(
            num_scalar_prefetch=0,
            grid=(n,),
            in_specs=[
                pl.BlockSpec((1, kk, hw), lambda i: (i, 0, 0)),
                # Constant-index operands (weight / gamma / beta).  Their VMEM
                # footprint is tiny here; switch to pipeline_mode=pl.Buffered(1)
                # once K*Cout grows to halve their VMEM (v7x 64 MiB budget).
                pl.BlockSpec((cout, kk), lambda i: (0, 0)),
                pl.BlockSpec((cout, 1), lambda i: (0, 0)),
                pl.BlockSpec((cout, 1), lambda i: (0, 0)),
            ],
            out_specs=pl.BlockSpec((1, cout, hw), lambda i: (i, 0, 0)),
        ),
        compiler_params=pltpu.CompilerParams(
            # No cross-step accumulator -> legitimately parallel; v7x shards
            # the sample axis across its two TensorCores.
            dimension_semantics=("parallel",),
            vmem_limit_bytes=32 * 1024 * 1024,
        ),
    )(patches_t.astype(jnp.bfloat16),                      # bf16 MXU inputs
      wmat.astype(jnp.bfloat16),
      gamma.reshape(cout, 1).astype(jnp.float32),
      beta.reshape(cout, 1).astype(jnp.float32))

    # (N, C, HW) is already NCHW-flat: pure reshape, no transpose/relayout.
    return out.reshape(n, cout, ho, wo)


def _num_groups(channels):
    ng = channels // 16 if channels % 16 == 0 else channels // 4
    return max(1, ng)


def down_block(x, params):
    """DownBlock.forward: layer1 (stride 2) then layer2 (stride 1), NCHW."""
    g1 = _num_groups(params["w1"].shape[0])
    g2 = _num_groups(params["w2"].shape[0])
    x = conv_block(x, params["w1"], params["gamma1"], params["beta1"],
                   stride=2, groups=g1)
    x = conv_block(x, params["w2"], params["gamma2"], params["beta2"],
                   stride=1, groups=g2)
    return x


# --------------------------- pure-JAX reference ----------------------------- #
def _ref_conv_block(x, weight, gamma, beta, stride, groups, eps=1e-5, slope=0.01):
    k = weight.shape[-1]
    xp = _reflect_pad(x, k // 2)
    y = jax.lax.conv_general_dilated(
        xp, weight, (stride, stride), "VALID",
        dimension_numbers=("NCHW", "OIHW", "NCHW"),
        precision=jax.lax.Precision.HIGHEST)               # true f32 gold
    n, c, h, w = y.shape
    yg = y.reshape(n, groups, c // groups, h, w)
    mu = yg.mean(axis=(2, 3, 4), keepdims=True)
    var = ((yg - mu) ** 2).mean(axis=(2, 3, 4), keepdims=True)
    yn = ((yg - mu) / jnp.sqrt(var + eps)).reshape(n, c, h, w)
    z = yn * gamma[None, :, None, None] + beta[None, :, None, None]
    return jnp.where(z >= 0, z, slope * z)


def _ref_down_block(x, params):
    g1 = _num_groups(params["w1"].shape[0])
    g2 = _num_groups(params["w2"].shape[0])
    x = _ref_conv_block(x, params["w1"], params["gamma1"], params["beta1"], 2, g1)
    x = _ref_conv_block(x, params["w2"], params["gamma2"], params["beta2"], 1, g2)
    return x


# ---------------------------------- main ------------------------------------ #
if __name__ == "__main__":
    inc, outc, ks = 4, 8, 3
    N, H, W = 2, 16, 16

    key = jax.random.PRNGKey(0)
    k_x, k_w1, k_w2, k_g1, k_b1, k_g2, k_b2 = jax.random.split(key, 7)

    x = jax.random.normal(k_x, (N, inc, H, W), dtype=jnp.float32)

    params = {
        "w1": 0.2 * jax.random.normal(k_w1, (outc, inc, ks, ks), jnp.float32),
        "gamma1": 1.0 + 0.05 * jax.random.normal(k_g1, (outc,), jnp.float32),
        "beta1": 0.05 * jax.random.normal(k_b1, (outc,), jnp.float32),
        "w2": 0.2 * jax.random.normal(k_w2, (outc, outc, ks, ks), jnp.float32),
        "gamma2": 1.0 + 0.05 * jax.random.normal(k_g2, (outc,), jnp.float32),
        "beta2": 0.05 * jax.random.normal(k_b2, (outc,), jnp.float32),
    }

    out = jax.block_until_ready(down_block(x, params))
    ref = jax.block_until_ready(_ref_down_block(x, params))

    assert out.shape == (N, outc, H // 2, W // 2), out.shape
    # Kernel feeds the MXU bf16 inputs (f32 accumulation); compare against the
    # f32 HIGHEST-precision reference at a bf16-appropriate tolerance.
    err = float(jnp.max(jnp.abs(out - ref)))
    assert jnp.allclose(out, ref, rtol=3e-2, atol=3e-2), err

    print("KERNEL_OK")
</pallas_src>

<mosaic_0001>
module attributes {stable_mosaic.version = 11 : i64} {
  func.func @_conv_gn_lrelu_kernel(%arg0: i32, %arg1: memref<1x36x64xbf16, #tpu.memory_space<vmem>>, %arg2: memref<8x36xbf16, #tpu.memory_space<vmem>>, %arg3: memref<8x1xf32, #tpu.memory_space<vmem>>, %arg4: memref<8x1xf32, #tpu.memory_space<vmem>>, %arg5: memref<1x8x64xf32, #tpu.memory_space<vmem>>) attributes {dimension_semantics = [#tpu.dimension_semantics<parallel>], iteration_bounds = array<i64: 2>, scalar_prefetch = 0 : i64, scratch_operands = 0 : i64, tpu.core_type = #tpu.core_type<tc>, window_params = [{transform_indices = @transform_0, window_bounds = array<i64: 1, 36, 64>}, {pipeline_mode = #tpu.pipeline_mode<synchronous>, transform_indices = @transform_1, window_bounds = array<i64: 8, 36>}, {pipeline_mode = #tpu.pipeline_mode<synchronous>, transform_indices = @transform_2, window_bounds = array<i64: 8, 1>}, {pipeline_mode = #tpu.pipeline_mode<synchronous>, transform_indices = @transform_3, window_bounds = array<i64: 8, 1>}, {transform_indices = @transform_4, window_bounds = array<i64: 1, 8, 64>}]} {
    %c0 = arith.constant 0 : index
    %c0_0 = arith.constant 0 : index
    %c0_1 = arith.constant 0 : index
    %0 = vector.load %arg1[%c0, %c0_0, %c0_1] : memref<1x36x64xbf16, #tpu.memory_space<vmem>>, vector<1x36x64xbf16>
    %1 = vector.shape_cast %0 : vector<1x36x64xbf16> to vector<36x64xbf16>
    %c0_2 = arith.constant 0 : index
    %c0_3 = arith.constant 0 : index
    %2 = vector.load %arg2[%c0_2, %c0_3] : memref<8x36xbf16, #tpu.memory_space<vmem>>, vector<8x36xbf16>
    %cst = arith.constant dense<0.000000e+00> : vector<8x64xf32>
    %3 = tpu.matmul %2, %1, %cst {dimension_numbers = #tpu.dot_dimension_numbers<[1], [0], [0], [1], [0, 0, 1, 1], [], []>} : vector<8x36xbf16>, vector<36x64xbf16>, vector<8x64xf32> -> vector<8x64xf32>
    %cst_4 = arith.constant dense<0.000000e+00> : vector<8xf32>
    %4 = vector.multi_reduction <add>, %3, %cst_4 [1] : vector<8x64xf32> to vector<8xf32>
    %5 = vector.shape_cast %4 : vector<8xf32> to vector<8x1xf32>
    %6 = arith.mulf %3, %3 : vector<8x64xf32>
    %cst_5 = arith.constant dense<0.000000e+00> : vector<8xf32>
    %7 = vector.multi_reduction <add>, %6, %cst_5 [1] : vector<8x64xf32> to vector<8xf32>
    %8 = vector.shape_cast %7 : vector<8xf32> to vector<8x1xf32>
    %9 = tpu.iota {dimensions = array<i32: 0>} : vector<8x1xi32>
    %cst_6 = arith.constant 0.000000e+00 : f32
    %10 = vector.broadcast %cst_6 : f32 to vector<8x1xf32>
    %cst_7 = arith.constant 0.000000e+00 : f32
    %11 = vector.broadcast %cst_7 : f32 to vector<8x1xf32>
    %12 = vector.extract_strided_slice %5 {offsets = [0, 0], sizes = [4, 1], strides = [1, 1]} : vector<8x1xf32> to vector<4x1xf32>
    %13 = vector.shape_cast %12 : vector<4x1xf32> to vector<1x4x1xf32>
    %cst_8 = arith.constant dense<0.000000e+00> : vector<1xf32>
    %14 = vector.multi_reduction <add>, %13, %cst_8 [1, 2] : vector<1x4x1xf32> to vector<1xf32>
    %15 = vector.shape_cast %14 : vector<1xf32> to vector<1x1x1xf32>
    %16 = vector.extract %15[0, 0, 0] : f32 from vector<1x1x1xf32>
    %17 = vector.broadcast %16 : f32 to vector<1x1xf32>
    %18 = vector.extract_strided_slice %8 {offsets = [0, 0], sizes = [4, 1], strides = [1, 1]} : vector<8x1xf32> to vector<4x1xf32>
    %19 = vector.shape_cast %18 : vector<4x1xf32> to vector<1x4x1xf32>
    %cst_9 = arith.constant dense<0.000000e+00> : vector<1xf32>
    %20 = vector.multi_reduction <add>, %19, %cst_9 [1, 2] : vector<1x4x1xf32> to vector<1xf32>
    %21 = vector.shape_cast %20 : vector<1xf32> to vector<1x1x1xf32>
    %22 = vector.extract %21[0, 0, 0] : f32 from vector<1x1x1xf32>
    %23 = vector.broadcast %22 : f32 to vector<1x1xf32>
    %cst_10 = arith.constant 3.906250e-03 : f32
    %24 = vector.broadcast %cst_10 : f32 to vector<1x1xf32>
    %25 = arith.mulf %17, %24 : vector<1x1xf32>
    %cst_11 = arith.constant 3.906250e-03 : f32
    %26 = vector.broadcast %cst_11 : f32 to vector<1x1xf32>
    %27 = arith.mulf %23, %26 : vector<1x1xf32>
    %28 = arith.mulf %25, %25 : vector<1x1xf32>
    %29 = arith.subf %27, %28 : vector<1x1xf32>
    %cst_12 = arith.constant 9.99999974E-6 : f32
    %30 = vector.broadcast %cst_12 : f32 to vector<1x1xf32>
    %31 = arith.addf %29, %30 : vector<1x1xf32>
    %32 = math.rsqrt %31 : vector<1x1xf32>
    %c0_i32 = arith.constant 0 : i32
    %33 = vector.broadcast %c0_i32 : i32 to vector<8x1xi32>
    %34 = arith.cmpi sge, %9, %33 : vector<8x1xi32>
    %c4_i32 = arith.constant 4 : i32
    %35 = vector.broadcast %c4_i32 : i32 to vector<8x1xi32>
    %36 = arith.cmpi slt, %9, %35 : vector<8x1xi32>
    %37 = arith.andi %34, %36 : vector<8x1xi1>
    %38 = vector.shape_cast %25 : vector<1x1xf32> to vector<1x1xf32>
    %39 = vector.broadcast %38 : vector<1x1xf32> to vector<8x1xf32>
    %40 = arith.select %37, %39, %10 : vector<8x1xi1>, vector<8x1xf32>
    %41 = vector.shape_cast %32 : vector<1x1xf32> to vector<1x1xf32>
    %42 = vector.broadcast %41 : vector<1x1xf32> to vector<8x1xf32>
    %43 = arith.select %37, %42, %11 : vector<8x1xi1>, vector<8x1xf32>
    %44 = vector.extract_strided_slice %5 {offsets = [4, 0], sizes = [4, 1], strides = [1, 1]} : vector<8x1xf32> to vector<4x1xf32>
    %45 = vector.shape_cast %44 : vector<4x1xf32> to vector<1x4x1xf32>
    %cst_13 = arith.constant dense<0.000000e+00> : vector<1xf32>
    %46 = vector.multi_reduction <add>, %45, %cst_13 [1, 2] : vector<1x4x1xf32> to vector<1xf32>
    %47 = vector.shape_cast %46 : vector<1xf32> to vector<1x1x1xf32>
    %48 = vector.extract %47[0, 0, 0] : f32 from vector<1x1x1xf32>
    %49 = vector.broadcast %48 : f32 to vector<1x1xf32>
    %50 = vector.extract_strided_slice %8 {offsets = [4, 0], sizes = [4, 1], strides = [1, 1]} : vector<8x1xf32> to vector<4x1xf32>
    %51 = vector.shape_cast %50 : vector<4x1xf32> to vector<1x4x1xf32>
    %cst_14 = arith.constant dense<0.000000e+00> : vector<1xf32>
    %52 = vector.multi_reduction <add>, %51, %cst_14 [1, 2] : vector<1x4x1xf32> to vector<1xf32>
    %53 = vector.shape_cast %52 : vector<1xf32> to vector<1x1x1xf32>
    %54 = vector.extract %53[0, 0, 0] : f32 from vector<1x1x1xf32>
    %55 = vector.broadcast %54 : f32 to vector<1x1xf32>
    %cst_15 = arith.constant 3.906250e-03 : f32
    %56 = vector.broadcast %cst_15 : f32 to vector<1x1xf32>
    %57 = arith.mulf %49, %56 : vector<1x1xf32>
    %cst_16 = arith.constant 3.906250e-03 : f32
    %58 = vector.broadcast %cst_16 : f32 to vector<1x1xf32>
    %59 = arith.mulf %55, %58 : vector<1x1xf32>
    %60 = arith.mulf %57, %57 : vector<1x1xf32>
    %61 = arith.subf %59, %60 : vector<1x1xf32>
    %cst_17 = arith.constant 9.99999974E-6 : f32
    %62 = vector.broadcast %cst_17 : f32 to vector<1x1xf32>
    %63 = arith.addf %61, %62 : vector<1x1xf32>
    %64 = math.rsqrt %63 : vector<1x1xf32>
    %c4_i32_18 = arith.constant 4 : i32
    %65 = vector.broadcast %c4_i32_18 : i32 to vector<8x1xi32>
    %66 = arith.cmpi sge, %9, %65 : vector<8x1xi32>
    %c8_i32 = arith.constant 8 : i32
    %67 = vector.broadcast %c8_i32 : i32 to vector<8x1xi32>
    %68 = arith.cmpi slt, %9, %67 : vector<8x1xi32>
    %69 = arith.andi %66, %68 : vector<8x1xi1>
    %70 = vector.shape_cast %57 : vector<1x1xf32> to vector<1x1xf32>
    %71 = vector.broadcast %70 : vector<1x1xf32> to vector<8x1xf32>
    %72 = arith.select %69, %71, %40 : vector<8x1xi1>, vector<8x1xf32>
    %73 = vector.shape_cast %64 : vector<1x1xf32> to vector<1x1xf32>
    %74 = vector.broadcast %73 : vector<1x1xf32> to vector<8x1xf32>
    %75 = arith.select %69, %74, %43 : vector<8x1xi1>, vector<8x1xf32>
    %76 = vector.broadcast %72 : vector<8x1xf32> to vector<8x64xf32>
    %77 = arith.subf %3, %76 : vector<8x64xf32>
    %78 = vector.broadcast %75 : vector<8x1xf32> to vector<8x64xf32>
    %79 = arith.mulf %77, %78 : vector<8x64xf32>
    %c0_19 = arith.constant 0 : index
    %c0_20 = arith.constant 0 : index
    %80 = vector.load %arg3[%c0_19, %c0_20] : memref<8x1xf32, #tpu.memory_space<vmem>>, vector<8x1xf32>
    %81 = vector.broadcast %80 : vector<8x1xf32> to vector<8x64xf32>
    %82 = arith.mulf %79, %81 : vector<8x64xf32>
    %c0_21 = arith.constant 0 : index
    %c0_22 = arith.constant 0 : index
    %83 = vector.load %arg4[%c0_21, %c0_22] : memref<8x1xf32, #tpu.memory_space<vmem>>, vector<8x1xf32>
    %84 = vector.broadcast %83 : vector<8x1xf32> to vector<8x64xf32>
    %85 = arith.addf %82, %84 : vector<8x64xf32>
    %cst_23 = arith.constant 0.000000e+00 : f32
    %86 = vector.broadcast %cst_23 : f32 to vector<8x64xf32>
    %87 = arith.cmpf oge, %85, %86 : vector<8x64xf32>
    %cst_24 = arith.constant 0.00999999977 : f32
    %88 = vector.broadcast %cst_24 : f32 to vector<8x64xf32>
    %89 = arith.mulf %88, %85 : vector<8x64xf32>
    %90 = arith.select %87, %85, %89 : vector<8x64xi1>, vector<8x64xf32>
    %c0_25 = arith.constant 0 : index
    %c0_26 = arith.constant 0 : index
    %c0_27 = arith.constant 0 : index
    %91 = vector.load %arg5[%c0_25, %c0_26, %c0_27] : memref<1x8x64xf32, #tpu.memory_space<vmem>>, vector<1x8x64xf32>
    %92 = vector.shape_cast %91 : vector<1x8x64xf32> to vector<8x64xf32>
    %93 = vector.shape_cast %90 : vector<8x64xf32> to vector<1x8x64xf32>
    tpu.vector_store %arg5[%c0_25, %c0_26, %c0_27], %93 {strides = array<i32>} : memref<1x8x64xf32, #tpu.memory_space<vmem>>, vector<1x8x64xf32>,
    return
  }
  func.func @transform_0(%arg0: i32) -> (i32, i32, i32) {
    %c0_i32 = arith.constant 0 : i32
    %c0_i32_0 = arith.constant 0 : i32
    %c0_i32_1 = arith.constant 0 : i32
    return %arg0, %c0_i32, %c0_i32_0 : i32, i32, i32
  }
  func.func @transform_1(%arg0: i32) -> (i32, i32) {
    %c0_i32 = arith.constant 0 : i32
    %c0_i32_0 = arith.constant 0 : i32
    %c0_i32_1 = arith.constant 0 : i32
    return %c0_i32, %c0_i32_0 : i32, i32
  }
  func.func @transform_2(%arg0: i32) -> (i32, i32) {
    %c0_i32 = arith.constant 0 : i32
    %c0_i32_0 = arith.constant 0 : i32
    %c0_i32_1 = arith.constant 0 : i32
    return %c0_i32, %c0_i32_0 : i32, i32
  }
  func.func @transform_3(%arg0: i32) -> (i32, i32) {
    %c0_i32 = arith.constant 0 : i32
    %c0_i32_0 = arith.constant 0 : i32
    %c0_i32_1 = arith.constant 0 : i32
    return %c0_i32, %c0_i32_0 : i32, i32
  }
  func.func @transform_4(%arg0: i32) -> (i32, i32, i32) {
    %c0_i32 = arith.constant 0 : i32
    %c0_i32_0 = arith.constant 0 : i32
    %c0_i32_1 = arith.constant 0 : i32
    return %arg0, %c0_i32, %c0_i32_0 : i32, i32, i32
  }
}

</mosaic_0001>

<llo_original>
// kernel: tpu_custom_call.1
$region0: #{tpu_custom_call.1}
  #allocation0 [shape = 'u32[]', space=smem, size = 0x4, offset = 0x4, fixed_abs, tag = 'smem constant byte address 0x4 - core index']
  #allocation1 [shape = 'u32[72,128]{1,0:T(1,128)}', space=vmem, size = 0x9000, scoped, tag = 'internal scratch']
  %s0 = inlined_call_operand.vmem [shape: bf16[2,36,64], index: 0, kind: input, shape index: {}]
  %s1 = inlined_call_operand.vmem [shape: bf16[8,36], index: 1, kind: input, shape index: {}]
  %s2 = inlined_call_operand.vmem [shape: f32[8,1], index: 2, kind: input, shape index: {}]
  %s3 = inlined_call_operand.vmem [shape: f32[8,1], index: 3, kind: input, shape index: {}]
  %s4 = inlined_call_operand.hbm [shape: f32[2,8,64], index: 4, kind: output, shape index: {}]
  %s5 = sld [smem:[#allocation0]]
  $region49: #{tpu_custom_call.1} parent=0
    _
  %s7 = ssub.s32 1, %s5
  %s8 = scalar_select 0, %s7, %s5
  $region1: #{tpu_custom_call.1} parent=0
    #allocation2 [shape = 'u8[8192]{0}', space=vmem, size = 0x2000, scoped, tag = 'output window, operand 0']
    #allocation3 [shape = 's32[2]{0}', space=sflag, size = 0x8, scoped, tag = 'scoped memory for tpu_custom_call.1']
    %9 = vsyncpa [#allocation3], 0
    %s10 = scalar_lea.sflag [#allocation3], 1
    %11 = vsyncpa %s10, 0
    loop: start=0, step=1, limit=4
    $region2: #{tpu_custom_call.1} parent=1 // loop_pre_header
      _
    $region3: #{tpu_custom_call.1} parent=1 // loop_header
      %s13 = sphi 0, %s17
      %p14 = scmp.ge.s32.totalorder %s13, 4
      %s23 = sphi 0, %s25
      %s26 = sphi 0, %s23
      %s27 = sphi 0, %s26
      %s43 = sphi 0, %s27
      %s47 = sphi 0, %s47
      %s49 = sphi 0, %s47
      %s50 = sphi 0, %s49
      %s64 = sphi 0, %s50
      %s68 = sphi 0, %s68
      %s70 = sphi 0, %s68
      %s71 = sphi 0, %s70
      %s85 = sphi 0, %s71
      %s89 = sphi 0, %s89
      %s91 = sphi 0, %s89
      %s92 = sphi 0, %s91
      %s106 = sphi 0, %s92
      %s112 = sphi 0, %s114
      %s115 = sphi 0, %s112
      %s116 = sphi 0, %s115
      %s132 = sphi 0, %s116
    $region4: #{tpu_custom_call.1} parent=1 // loop_header_branch
      %16 = sbr.rel (%p14) target = $region8
    $region5: #{tpu_custom_call.1} parent=1 // loop_body
      %s18 = ssub.s32 %s13, 1
      %s19 = ssub.s32 %s13, 2
      %s20 = sadd.s32 %s13, 1
      %s21 = ssub.s32 %s13, %s20
      %p22 = scmp.eq.s32.totalorder %s21, 0
      %s24 = sadd.s32 %s23, 1
      %s25 = scalar_select %p22, %s23, %s24
      %p28 = pneg %p22
      %p29 = scmp.eq.s32.totalorder %s13, 1
      %p30 = por %p28, %p29
      %p31 = scmp.ne.s32.totalorder %s23, %s26
      %p32 = scmp.eq.s32.totalorder %s13, 0
      %p33 = por %p31, %p32
      %p34 = scmp.ne.s32.totalorder %s23, %s26
      %p35 = scmp.eq.s32.totalorder %s18, 1
      %p36 = por %p34, %p35
      %p37 = scmp.ne.s32.totalorder %s26, %s27
      %p38 = scmp.eq.s32.totalorder %s18, 0
      %p39 = por %p37, %p38
      %p40 = scmp.ne.s32.totalorder %s26, %s27
      %p41 = scmp.eq.s32.totalorder %s19, 1
      %p42 = por %p40, %p41
      %p44 = scmp.ne.s32.totalorder %s27, %s43
      %p45 = scmp.eq.s32.totalorder %s19, 0
      %p46 = por %p44, %p45
      %s48 = sadd.s32 %s47, 1
      %p51 = scmp.eq.s32.totalorder %s13, 1
      %p52 = scmp.ne.s32.totalorder %s47, %s49
      %p53 = scmp.eq.s32.totalorder %s13, 0
      %p54 = por %p52, %p53
      %p55 = scmp.ne.s32.totalorder %s47, %s49
      %p56 = scmp.eq.s32.totalorder %s18, 1
      %p57 = por %p55, %p56
      %p58 = scmp.ne.s32.totalorder %s49, %s50
      %p59 = scmp.eq.s32.totalorder %s18, 0
      %p60 = por %p58, %p59
      %p61 = scmp.ne.s32.totalorder %s49, %s50
      %p62 = scmp.eq.s32.totalorder %s19, 1
      %p63 = por %p61, %p62
      %p65 = scmp.ne.s32.totalorder %s50, %s64
      %p66 = scmp.eq.s32.totalorder %s19, 0
      %p67 = por %p65, %p66
      %s69 = sadd.s32 %s68, 1
      %p72 = scmp.eq.s32.totalorder %s13, 1
      %p73 = scmp.ne.s32.totalorder %s68, %s70
      %p74 = scmp.eq.s32.totalorder %s13, 0
      %p75 = por %p73, %p74
      %p76 = scmp.ne.s32.totalorder %s68, %s70
      %p77 = scmp.eq.s32.totalorder %s18, 1
      %p78 = por %p76, %p77
      %p79 = scmp.ne.s32.totalorder %s70, %s71
      %p80 = scmp.eq.s32.totalorder %s18, 0
      %p81 = por %p79, %p80
      %p82 = scmp.ne.s32.totalorder %s70, %s71
      %p83 = scmp.eq.s32.totalorder %s19, 1
      %p84 = por %p82, %p83
      %p86 = scmp.ne.s32.totalorder %s71, %s85
      %p87 = scmp.eq.s32.totalorder %s19, 0
      %p88 = por %p86, %p87
      %s90 = sadd.s32 %s89, 1
      %p93 = scmp.eq.s32.totalorder %s13, 1
      %p94 = scmp.ne.s32.totalorder %s89, %s91
      %p95 = scmp.eq.s32.totalorder %s13, 0
      %p96 = por %p94, %p95
      %p97 = scmp.ne.s32.totalorder %s89, %s91
      %p98 = scmp.eq.s32.totalorder %s18, 1
      %p99 = por %p97, %p98
      %p100 = scmp.ne.s32.totalorder %s91, %s92
      %p101 = scmp.eq.s32.totalorder %s18, 0
      %p102 = por %p100, %p101
      %p103 = scmp.ne.s32.totalorder %s91, %s92
      %p104 = scmp.eq.s32.totalorder %s19, 1
      %p105 = por %p103, %p104
      %p107 = scmp.ne.s32.totalorder %s92, %s106
      %p108 = scmp.eq.s32.totalorder %s19, 0
      %p109 = por %p107, %p108
      %s110 = ssub.s32 %s13, %s20
      %p111 = scmp.eq.s32.totalorder %s110, 0
      %s113 = sadd.s32 %s112, 1
      %s114 = scalar_select %p111, %s112, %s113
      %p117 = pneg %p111
      %p118 = scmp.eq.s32.totalorder %s13, 1
      %p119 = por %p117, %p118
      %p120 = scmp.ne.s32.totalorder %s112, %s115
      %p121 = scmp.eq.s32.totalorder %s13, 0
      %p122 = por %p120, %p121
      %p123 = scmp.ne.s32.totalorder %s112, %s115
      %p124 = scmp.eq.s32.totalorder %s18, 1
      %p125 = por %p123, %p124
      %p126 = scmp.ne.s32.totalorder %s115, %s116
      %p127 = scmp.eq.s32.totalorder %s18, 0
      %p128 = por %p126, %p127
      %p129 = scmp.ne.s32.totalorder %s115, %s116
      %p130 = scmp.eq.s32.totalorder %s19, 1
      %p131 = por %p129, %p130
      %p133 = scmp.ne.s32.totalorder %s116, %s132
      %p134 = scmp.eq.s32.totalorder %s19, 0
      %p135 = por %p133, %p134
      %p136 = scmp.le.s32.totalorder 1, %s13
      %p137 = scmp.lt.s32.totalorder %s13, 3
      %p138 = pnand %p136, %p137
      %p139 = pneg %p138
      // Predicated region
      $region9: #{tpu_custom_call.1} parent=5 // pred_check
        _
      $region10: #{tpu_custom_call.1} parent=5 // pred_check_branch
        %141 = sbr.rel (%p138) target = $region12
      $region11: #{tpu_custom_call.1} parent=5 // pred_region
        %s142 = ssub.s32 %s13, 1
        // Predicated region
        $region13: #{tpu_custom_call.1} parent=11 // pred_check
          %p143 = pneg %p60
        $region14: #{tpu_custom_call.1} parent=11 // pred_check_branch
          %145 = sbr.rel (%p143) target = $region16
        $region15: #{tpu_custom_call.1} parent=11 // pred_region
          _
        $region16: #{tpu_custom_call.1} parent=11 // pred_fallthru
          _
        // Predicated region
        $region17: #{tpu_custom_call.1} parent=11 // pred_check
          %p146 = pneg %p81
        $region18: #{tpu_custom_call.1} parent=11 // pred_check_branch
          %148 = sbr.rel (%p146) target = $region20
        $region19: #{tpu_custom_call.1} parent=11 // pred_region
          _
        $region20: #{tpu_custom_call.1} parent=11 // pred_fallthru
          _
        // Predicated region
        $region21: #{tpu_custom_call.1} parent=11 // pred_check
          %p149 = pneg %p102
        $region22: #{tpu_custom_call.1} parent=11 // pred_check_branch
          %151 = sbr.rel (%p149) target = $region24
        $region23: #{tpu_custom_call.1} parent=11 // pred_region
          _
        $region24: #{tpu_custom_call.1} parent=11 // pred_fallthru
          _
      $region12: #{tpu_custom_call.1} parent=5 // pred_fallthru
        _
      %p152 = scmp.lt.s32.totalorder %s13, 2
      // Predicated region
      $region25: #{tpu_custom_call.1} parent=5 // pred_check
        %p153 = pneg %p152
      $region26: #{tpu_custom_call.1} parent=5 // pred_check_branch
        %155 = sbr.rel (%p153) target = $region28
      $region27: #{tpu_custom_call.1} parent=5 // pred_region
        // Predicated region
        $region29: #{tpu_custom_call.1} parent=27 // pred_check
          %p156 = pneg %p33
        $region30: #{tpu_custom_call.1} parent=27 // pred_check_branch
          %158 = sbr.rel (%p156) target = $region32
        $region31: #{tpu_custom_call.1} parent=27 // pred_region
          %p159 = scmp.lt.s32.totalorder %s13, 1
          %s160 = scalar_select %p159, %s13, 1
          %s161 = smul.addr %s160, 5
          %s162 = smul.addr %s161, 4
          %s163 = scalar_lea.vmem %s0, %s162
        $region32: #{tpu_custom_call.1} parent=27 // pred_fallthru
          _
      $region28: #{tpu_custom_call.1} parent=5 // pred_fallthru
        _
      %p164 = scmp.le.s32.totalorder 1, %s13
      %p165 = scmp.lt.s32.totalorder %s13, 3
      %p166 = pnand %p164, %p165
      %p167 = pneg %p166
      // Predicated region
      $region33: #{tpu_custom_call.1} parent=5 // pred_check
        _
      $region34: #{tpu_custom_call.1} parent=5 // pred_check_branch
        %169 = sbr.rel (%p166) target = $region36
      $region35: #{tpu_custom_call.1} parent=5 // pred_region
        %s170 = ssub.s32 %s13, 1
        %p171 = scmp.lt.s32.totalorder %s18, 1
        %s172 = scalar_select %p171, %s18, 1
        %s173 = smul.addr %s172, 5
        %s174 = smul.addr %s173, 4
        %s175 = scalar_lea.vmem %s0, %s174
        %p176 = pneg %p39
        %p177 = pneg %p36
        %p178 = pneg %p60
        %p179 = pneg %p57
        %p180 = pneg %p81
        %p181 = pneg %p78
        %p182 = pneg %p102
        %p183 = pneg %p99
        %p184 = pneg %p128
        %p185 = pneg %p125
        %s186 = sand.u32 %s115, 1
        %s187 = scalar_lea.sflag [#allocation3], %s186
        %s188 = sand.u32 %s115, 1
        %s189 = smul.addr %s188, 8
        %s190 = scalar_lea.vmem [#allocation2], %s189
        %p191 = scmp.lt.s32.totalorder %s18, 1
        %s192 = scalar_select %p191, %s18, 1
        %s193 = smul.addr %s192, 5
        %s194 = smul.addr %s193, 4
        %s195 = scalar_lea.vmem %s0, %s194
        %v197 = vld [vmem:[%s195] sm:$0xf]
        %v198 = vld [vmem:[%s195 + $0x4] sm:$0xf]
        %v199 = vld [vmem:[%s195 + $0x8] sm:$0xf]
        %v200 = vld [vmem:[%s195 + $0xc] sm:$0xf]
        %v201 = vld [vmem:[%s195 + $0x10] sm:$0x3]
        %v202 = vld [vmem:[%s1] sm:$0xf]
        %v208 = vunpack.c.l.b16 %v197
        %v209 = vunpack.c.l.b16 %v198
        %v210 = vunpack.c.l.b16 %v199
        %v211 = vunpack.c.l.b16 %v200
        %v212 = vunpack.c.l.b16 %v201
        %v213 = vpack.c.b16 %v209, %v208
        %v214 = vpack.c.b16 %v211, %v210
        %v215 = vpack.c.b16 %v212, %v212
        %vm218 = vcmask 293888
        %v220 = vsel %vm218, %v202, 0
        %vm222 = vcmask 1041408
        %v224 = vsel %vm222, %v215, 0
        %226 = vmatpush.bf16.msra.mxu0 0
        %227 = vmatpush.bf16.msra.mxu0 0
        %228 = vmatpush.bf16.msra.mxu0 0
        %229 = vmatpush.bf16.msra.mxu0 0
        %230 = vmatpush.bf16.msra.mxu0 0
        %231 = vmatpush.bf16.msra.mxu0 %v224
        %232 = vmatpush.bf16.msra.mxu0 %v214
        %233 = vmatpush.bf16.msra.mxu0 %v213
        %234 = vmatmul.bf16.gmra.mxu0 %v220
        %v235 = vpop.f32.mrf.mxu0
        %v236 = vadd.f32 0.0, %v235
        %v237 = vpop.f32.mrf.mxu0
        %238 = vdwg.mxu0
        %vm239 = vcmask 523264
        %v240 = vsel %vm239, %v236, 0.0
        %241 = vadd.xlane.f32.xlu0 %v240
        %v242 = vpop.xlane.xlu0 %241
        %v243 = vmul.f32 %v236, %v236
        %v244 = vsel %vm239, %v243, 0.0
        %245 = vadd.xlane.f32.xlu0 %v244
        %v246 = vpop.xlane.xlu0 %245
        %v247 = vlaneseq
        %v248 = vshrl.u32 %v247, 7
        %vm249 = vcmask 3072
        %v250 = vsel %vm249, %v242, 0.0
        %251 = vadd.xlane.f32.xlu0 %v250
        %v252 = vpop.xlane.xlu0 %251
        %v253 = vrot.slane %v252, 4
        %v254 = vadd.f32 %v252, %v253
        %v255 = vrot.slane %v254, 2
        %v256 = vadd.f32 %v254, %v255
        %v257 = vrot.slane %v256, 1
        %v258 = vadd.f32 %v256, %v257
        %s259 = vtos %v258
        %v260 = vstv %s259
        %v261 = vsel %vm249, %v246, 0.0
        %262 = vadd.xlane.f32.xlu0 %v261
        %v263 = vpop.xlane.xlu0 %262
        %v264 = vrot.slane %v263, 4
        %v265 = vadd.f32 %v263, %v264
        %v266 = vrot.slane %v265, 2
        %v267 = vadd.f32 %v265, %v266
        %v268 = vrot.slane %v267, 1
        %v269 = vadd.f32 %v267, %v268
        %s270 = vtos %v269
        %v271 = vstv %s270
        %v272 = vmul.f32 %v260, 0.00390625
        %v273 = vmul.f32 %v271, 0.00390625
        %v274 = vmul.f32 %v272, %v272
        %v275 = vsub.f32 %v273, %v274
        %v276 = vadd.f32 %v275, 1e-05
        %v277 = vrsqrt.pop %v276
        %v278 = vmul.f32 %v277, %v276
        %v279 = vmul.f32 %v278, %v277
        %v280 = vmul.f32 0.5, %v279
        %v281 = vsub.f32 1.5, %v280
        %v282 = vmul.f32 %v277, %v281
        %vm283 = vweird.f32 %v276
        %vm284 = vweird.f32 %v277
        %vm285 = vmor %vm283, %vm284
        %v286 = vsel %vm285, %v277, %v282
        %vm287 = vcmp.ge.s32.totalorder %v248, 0
        %vm288 = vcmp.lt.s32.totalorder %v248, 4
        %vm289 = vmand %vm287, %vm288
        %v290 = vsel %vm289, %v272, 0.0
        %v291 = vsel %vm289, %v286, 0.0
        %v293 = vrot.slane %v242, 4
        %v295 = vsel %vm249, %v293, 0.0
        %296 = vadd.xlane.f32.xlu0 %v295
        %v297 = vpop.xlane.xlu0 %296
        %v298 = vrot.slane %v297, 4
        %v299 = vadd.f32 %v297, %v298
        %v300 = vrot.slane %v299, 2
        %v301 = vadd.f32 %v299, %v300
        %v302 = vrot.slane %v301, 1
        %v303 = vadd.f32 %v301, %v302
        %s304 = vtos %v303
        %v305 = vstv %s304
        %v307 = vrot.slane %v246, 4
        %v309 = vsel %vm249, %v307, 0.0
        %310 = vadd.xlane.f32.xlu0 %v309
        %v311 = vpop.xlane.xlu0 %310
        %v312 = vrot.slane %v311, 4
        %v313 = vadd.f32 %v311, %v312
        %v314 = vrot.slane %v313, 2
        %v315 = vadd.f32 %v313, %v314
        %v316 = vrot.slane %v315, 1
        %v317 = vadd.f32 %v315, %v316
        %s318 = vtos %v317
        %v319 = vstv %s318
        %v320 = vmul.f32 %v305, 0.00390625
        %v321 = vmul.f32 %v319, 0.00390625
        %v322 = vmul.f32 %v320, %v320
        %v323 = vsub.f32 %v321, %v322
        %v324 = vadd.f32 %v323, 1e-05
        %v325 = vrsqrt.pop %v324
        %v326 = vmul.f32 %v325, %v324
        %v327 = vmul.f32 %v326, %v325
        %v328 = vmul.f32 0.5, %v327
        %v329 = vsub.f32 1.5, %v328
        %v330 = vmul.f32 %v325, %v329
        %vm331 = vweird.f32 %v324
        %vm332 = vweird.f32 %v325
        %vm333 = vmor %vm331, %vm332
        %v334 = vsel %vm333, %v325, %v330
        %vm335 = vcmp.ge.s32.totalorder %v248, 4
        %vm336 = vcmp.lt.s32.totalorder %v248, 8
        %vm337 = vmand %vm335, %vm336
        %v338 = vsel %vm337, %v320, %v290
        %v339 = vsel %vm337, %v334, %v291
        %v340 = vsub.f32 %v236, %v338
        %v341 = vmul.f32 %v340, %v339
        %v342 = vld [vmem:[%s2] sm:$0xff]
        %344 = vset.pattern.permute.xlu0 0
        %345 = vperm.xlu0 %344, %v342
        %v346 = vpop.permute.xlu0 %345
        %v348 = vmul.f32 %v341, %v346
        %v349 = vld [vmem:[%s3] sm:$0xff]
        %351 = vset.pattern.permute.xlu0 0
        %352 = vperm.xlu0 %351, %v349
        %v353 = vpop.permute.xlu0 %352
        %v355 = vadd.f32 %v348, %v353
        %vm356 = vcmp.ge.f32.partialorder %v355, 0.0
        %v357 = vmul.f32 %v355, 0.01
        %v358 = vsel %vm356, %v355, %v357
        %359 = vst.msk [vmem:[%s190] sm:$0xff] %vm239, %v358
        %s360 = sand.u32 %s115, 1
        %s361 = scalar_lea.sflag [#allocation3], %s360
        %s362 = sand.u32 %s115, 1
        %s363 = smul.addr %s362, 8
        %s364 = scalar_lea.vmem [#allocation2], %s363
        // Predicated region
        $region37: #{tpu_custom_call.1} parent=35 // pred_check
          %p365 = pneg %p125
        $region38: #{tpu_custom_call.1} parent=35 // pred_check_branch
          %367 = sbr.rel (%p365) target = $region40
        $region39: #{tpu_custom_call.1} parent=35 // pred_region
          %369 = vsyncadd %s361, 0
          %s370 = smul.addr %s18, 8
          %s371 = scalar_lea.hbm %s4, %s370
          %s373 = sshll.u32 %s364, 4
          %s374 = int_to_ptr.vmem [resolvable:$true] %s373
          %s375 = sshll.u32 %s371, 4
          %s376 = int_to_ptr.hbm [resolvable:$true] %s375
          %378 = dma.vmem_to_hbm [thread:$0]  %s374, 128, %s376, %s361
        $region40: #{tpu_custom_call.1} parent=35 // pred_fallthru
          _
      $region36: #{tpu_custom_call.1} parent=5 // pred_fallthru
        _
      %p379 = scmp.le.s32.totalorder 2, %s13
      // Predicated region
      $region41: #{tpu_custom_call.1} parent=5 // pred_check
        %p380 = pneg %p379
      $region42: #{tpu_custom_call.1} parent=5 // pred_check_branch
        %382 = sbr.rel (%p380) target = $region44
      $region43: #{tpu_custom_call.1} parent=5 // pred_region
        %s383 = ssub.s32 %s13, 2
        // Predicated region
        $region45: #{tpu_custom_call.1} parent=43 // pred_check
          %p384 = pneg %p131
        $region46: #{tpu_custom_call.1} parent=43 // pred_check_branch
          %386 = sbr.rel (%p384) target = $region48
        $region47: #{tpu_custom_call.1} parent=43 // pred_region
          %s387 = sand.u32 %s116, 1
          %s388 = scalar_lea.sflag [#allocation3], %s387
          %s389 = sand.u32 %s116, 1
          %s390 = smul.addr %s389, 8
          %s391 = scalar_lea.vmem [#allocation2], %s390
          %393 = dma.done %s388, 128
        $region48: #{tpu_custom_call.1} parent=43 // pred_fallthru
          _
      $region44: #{tpu_custom_call.1} parent=5 // pred_fallthru
        _
    $region6: #{tpu_custom_call.1} parent=1 // loop_footer
      %s17 = sadd.s32 1, %s13
    $region7: #{tpu_custom_call.1} parent=1 // loop_footer_branch
      %12 = sbr.rel target = $region3
    $region8: #{tpu_custom_call.1} parent=1 // loop_exit
      _
    %394 = vsyncpa [#allocation3], 1
    %s395 = scalar_lea.sflag [#allocation3], 1
    %396 = vsyncpa %s395, 1

</llo_original>
